<compile_context>
chip_gen: v7x
topology: tpu7x:2x2x1
jax: 0.10.0
libtpu: 0.0.40
codegen_flags: <defaults>
</compile_context>

<pallas_src>
import functools

import jax
import jax.numpy as jnp
from jax.experimental import pallas as pl
from jax.experimental.pallas import tpu as pltpu


def _layernorm_kernel(x_ref, gb_ref, o_ref, *, eps: float):
    x = x_ref[...].astype(jnp.float32)                  # (tm, F)
    n = x.shape[-1]
    inv_n = 1.0 / n
    inv_nm1 = 1.0 / (n - 1)                             # unbiased (Bessel)
    # One-pass reduction: sum and sum-of-squares together (one sweep over x).
    sum_x = jnp.sum(x, axis=-1, keepdims=True)          # (tm, 1)
    sum_x2 = jnp.sum(x * x, axis=-1, keepdims=True)     # (tm, 1)
    mean = sum_x * inv_n
    var = (sum_x2 - n * mean * mean) * inv_nm1
    var = jnp.maximum(var, 0.0)                         # guard tiny negatives (cancellation)
    std = jnp.sqrt(var)
    # eps is added to std (NOT to var) per the module; exact divide — the op is
    # HBM-bound so one divide per row is completely hidden under the DMA.
    inv = 1.0 / (std + eps)                             # (tm, 1)
    gb = gb_ref[...].astype(jnp.float32)                # (2, F): row 0 = gamma, row 1 = beta
    g = gb[0:1, :]
    b = gb[1:2, :]
    o_ref[...] = (((x - mean) * inv) * g + b).astype(o_ref.dtype)


def _vmem_plan():
    """(tile budget bytes, vmem_limit_bytes or None) based on TPU generation.

    v5e/v6e have 128 MiB physical VMEM (default scoped 16/32 MiB), v7x only
    64 MiB per TensorCore.  Fall back to a budget that fits the smallest
    default scoped limit (v5e: 16 MiB) if the hardware query is unavailable.
    """
    try:
        cap = int(pltpu.get_tpu_info().vmem_capacity_bytes)
    except Exception:
        return 12 << 20, None
    if cap >= (96 << 20):          # v5e / v6e: 128 MiB physical
        return 48 << 20, 64 << 20
    return 24 << 20, 40 << 20      # v7x: 64 MiB per TC -> leave headroom


def _pick_row_tile(rows, feat, itemsize, *, vmem_budget_bytes, max_tile=4096):
    """Largest row tile (multiple of 8) fitting the VMEM budget, additionally
    capped so the grid has >=4 blocks (megacore sharding on v7x) whenever each
    block can still keep >=512 rows (the measured ~85%-of-roofline sweet spot).
    """
    # 2 double-buffered (in + out) tiles at the input dtype, plus ~3 (tile, F)
    # f32 temporaries worth of headroom for the in-kernel f32 math.
    per_row = 2 * 2 * feat * itemsize + 3 * feat * 4
    tile = max(8, vmem_budget_bytes // per_row)
    rows_up = -(-rows // 8) * 8                        # no bigger than needed
    tile = min(tile, max_tile, rows_up)
    # Keep at least `min_blocks` grid blocks so both v7x TensorCores get work.
    min_blocks = 4
    if rows_up >= min_blocks * 512:
        tile = min(tile, max(512, -(-rows_up // min_blocks)))
    tile = max(8, (tile // 8) * 8)
    return int(tile)


def layer_norm(x, a_2, b_2, eps=1e-6, *, row_tile=None):
    """x: (..., F). a_2, b_2: (F,). Returns same shape/dtype as x."""
    orig_shape = x.shape
    feat = orig_shape[-1]
    assert feat >= 2, "unbiased std (Bessel, /(N-1)) requires features >= 2"
    # TODO(synk): if feat is not a multiple of 128 the output stores are masked
    # partial vst's; padding feat would require masking the in-kernel mean/std
    # reductions too, so odd hidden sizes are left on the (correct) slow path.
    x2 = x.reshape(-1, feat)
    rows = x2.shape[0]
    itemsize = jnp.dtype(x.dtype).itemsize

    vmem_budget, vmem_limit = _vmem_plan()
    if row_tile is None:
        row_tile = _pick_row_tile(rows, feat, itemsize, vmem_budget_bytes=vmem_budget)

    # No pad / slice: cdiv grid, ragged last block handled in-hardware
    # (OOB reads -> garbage rows that only feed dropped OOB writes).
    num_blocks = pl.cdiv(rows, row_tile)

    # Fold gamma/beta into a single (2, F) slab -> one small DMA per grid step.
    gb = jnp.stack([a_2.reshape(feat), b_2.reshape(feat)], axis=0)

    kernel = functools.partial(_layernorm_kernel, eps=float(eps))

    cp_kwargs = dict(dimension_semantics=("parallel",))   # v7x: shard row blocks over 2 TCs
    if vmem_limit is not None:
        cp_kwargs["vmem_limit_bytes"] = int(vmem_limit)

    cost = pl.CostEstimate(
        flops=8 * rows * feat,
        transcendentals=2 * rows,                                   # sqrt + divide per row
        bytes_accessed=2 * rows * feat * itemsize + 2 * feat * gb.dtype.itemsize,
    )

    out = pl.pallas_call(
        kernel,
        out_shape=jax.ShapeDtypeStruct((rows, feat), x.dtype),
        grid_spec=pltpu.PrefetchScalarGridSpec(
            num_scalar_prefetch=0,
            grid=(num_blocks,),
            in_specs=[
                pl.BlockSpec((row_tile, feat), lambda i: (i, 0)),
                pl.BlockSpec((2, feat), lambda i: (0, 0)),
            ],
            out_specs=pl.BlockSpec((row_tile, feat), lambda i: (i, 0)),
        ),
        compiler_params=pltpu.CompilerParams(**cp_kwargs),
        cost_estimate=cost,
    )(x2, gb)

    return out.reshape(orig_shape)


if __name__ == "__main__":
    key = jax.random.PRNGKey(0)
    batch, seq, hidden = 2, 8, 32

    x = jax.random.normal(key, (batch, seq, hidden), dtype=jnp.float32)
    # Parameters initialized as in __init__: ones / zeros (deterministic).
    a_2 = jnp.ones((hidden,), dtype=jnp.float32)
    b_2 = jnp.zeros((hidden,), dtype=jnp.float32)
    eps = 1e-6

    out = layer_norm(x, a_2, b_2, eps)
    jax.block_until_ready(out)

    # Pure-JAX reference (same torch semantics: unbiased std, std + eps).
    mean = jnp.mean(x, axis=-1, keepdims=True)
    std = jnp.sqrt(jnp.sum((x - mean) ** 2, axis=-1, keepdims=True) / (hidden - 1))
    ref = a_2 * (x - mean) / (std + eps) + b_2
    assert jnp.allclose(out, ref, atol=1e-4, rtol=1e-4), "mismatch vs reference"

    print("KERNEL_OK")
</pallas_src>

<mosaic_0001>
module attributes {stable_mosaic.version = 11 : i64} {
  func.func @_layernorm_kernel(%arg0: i32, %arg1: memref<16x32xf32, #tpu.memory_space<vmem>>, %arg2: memref<2x32xf32, #tpu.memory_space<vmem>>, %arg3: memref<16x32xf32, #tpu.memory_space<vmem>>) attributes {dimension_semantics = [#tpu.dimension_semantics<parallel>], iteration_bounds = array<i64: 1>, scalar_prefetch = 0 : i64, scratch_operands = 0 : i64, tpu.core_type = #tpu.core_type<tc>, window_params = [{transform_indices = @transform_0, window_bounds = array<i64: 16, 32>}, {pipeline_mode = #tpu.pipeline_mode<synchronous>, transform_indices = @transform_1, window_bounds = array<i64: 2, 32>}, {transform_indices = @transform_2, window_bounds = array<i64: 16, 32>}]} {
    %c0 = arith.constant 0 : index
    %c0_0 = arith.constant 0 : index
    %0 = vector.load %arg1[%c0, %c0_0] : memref<16x32xf32, #tpu.memory_space<vmem>>, vector<16x32xf32>
    %cst = arith.constant dense<0.000000e+00> : vector<16xf32>
    %1 = vector.multi_reduction <add>, %0, %cst [1] : vector<16x32xf32> to vector<16xf32>
    %2 = vector.shape_cast %1 : vector<16xf32> to vector<16x1xf32>
    %3 = arith.mulf %0, %0 : vector<16x32xf32>
    %cst_1 = arith.constant dense<0.000000e+00> : vector<16xf32>
    %4 = vector.multi_reduction <add>, %3, %cst_1 [1] : vector<16x32xf32> to vector<16xf32>
    %5 = vector.shape_cast %4 : vector<16xf32> to vector<16x1xf32>
    %cst_2 = arith.constant 3.125000e-02 : f32
    %6 = vector.broadcast %cst_2 : f32 to vector<16x1xf32>
    %7 = arith.mulf %2, %6 : vector<16x1xf32>
    %cst_3 = arith.constant 3.200000e+01 : f32
    %8 = vector.broadcast %cst_3 : f32 to vector<16x1xf32>
    %9 = arith.mulf %8, %7 : vector<16x1xf32>
    %10 = arith.mulf %9, %7 : vector<16x1xf32>
    %11 = arith.subf %5, %10 : vector<16x1xf32>
    %cst_4 = arith.constant 0.0322580636 : f32
    %12 = vector.broadcast %cst_4 : f32 to vector<16x1xf32>
    %13 = arith.mulf %11, %12 : vector<16x1xf32>
    %cst_5 = arith.constant 0.000000e+00 : f32
    %14 = vector.broadcast %cst_5 : f32 to vector<16x1xf32>
    %15 = arith.maximumf %13, %14 : vector<16x1xf32>
    %16 = math.sqrt %15 : vector<16x1xf32>
    %cst_6 = arith.constant 9.99999997E-7 : f32
    %17 = vector.broadcast %cst_6 : f32 to vector<16x1xf32>
    %18 = arith.addf %16, %17 : vector<16x1xf32>
    %cst_7 = arith.constant 1.000000e+00 : f32
    %19 = vector.broadcast %cst_7 : f32 to vector<16x1xf32>
    %20 = arith.divf %19, %18 : vector<16x1xf32>
    %c0_8 = arith.constant 0 : index
    %c0_9 = arith.constant 0 : index
    %21 = vector.load %arg2[%c0_8, %c0_9] : memref<2x32xf32, #tpu.memory_space<vmem>>, vector<2x32xf32>
    %22 = vector.extract_strided_slice %21 {offsets = [0, 0], sizes = [1, 32], strides = [1, 1]} : vector<2x32xf32> to vector<1x32xf32>
    %23 = vector.extract_strided_slice %21 {offsets = [1, 0], sizes = [1, 32], strides = [1, 1]} : vector<2x32xf32> to vector<1x32xf32>
    %24 = vector.broadcast %7 : vector<16x1xf32> to vector<16x32xf32>
    %25 = arith.subf %0, %24 : vector<16x32xf32>
    %26 = vector.broadcast %20 : vector<16x1xf32> to vector<16x32xf32>
    %27 = arith.mulf %25, %26 : vector<16x32xf32>
    %28 = vector.broadcast %22 : vector<1x32xf32> to vector<16x32xf32>
    %29 = arith.mulf %27, %28 : vector<16x32xf32>
    %30 = vector.broadcast %23 : vector<1x32xf32> to vector<16x32xf32>
    %31 = arith.addf %29, %30 : vector<16x32xf32>
    %c0_10 = arith.constant 0 : index
    %c0_11 = arith.constant 0 : index
    %32 = vector.load %arg3[%c0_10, %c0_11] : memref<16x32xf32, #tpu.memory_space<vmem>>, vector<16x32xf32>
    tpu.vector_store %arg3[%c0_10, %c0_11], %31 {strides = array<i32>} : memref<16x32xf32, #tpu.memory_space<vmem>>, vector<16x32xf32>,
    return
  }
  func.func @transform_0(%arg0: i32) -> (i32, i32) {
    %c0_i32 = arith.constant 0 : i32
    %c0_i32_0 = arith.constant 0 : i32
    return %arg0, %c0_i32 : i32, i32
  }
  func.func @transform_1(%arg0: i32) -> (i32, i32) {
    %c0_i32 = arith.constant 0 : i32
    %c0_i32_0 = arith.constant 0 : i32
    %c0_i32_1 = arith.constant 0 : i32
    return %c0_i32, %c0_i32_0 : i32, i32
  }
  func.func @transform_2(%arg0: i32) -> (i32, i32) {
    %c0_i32 = arith.constant 0 : i32
    %c0_i32_0 = arith.constant 0 : i32
    return %arg0, %c0_i32 : i32, i32
  }
}

</mosaic_0001>

<llo_original>
// kernel: tpu_custom_call.1
$region0: #{tpu_custom_call.1}
  #allocation0 [shape = 'u32[]', space=smem, size = 0x4, offset = 0x4, fixed_abs, tag = 'smem constant byte address 0x4 - core index']
  #allocation1 [shape = 'u32[144,128]{1,0:T(1,128)}', space=vmem, size = 0x12000, scoped, tag = 'internal scratch']
  %s0 = inlined_call_operand.hbm [shape: f32[16,32], index: 0, kind: input, shape index: {}]
  %s1 = inlined_call_operand.vmem [shape: f32[2,32], index: 1, kind: input, shape index: {}]
  %s2 = inlined_call_operand.hbm [shape: f32[16,32], index: 2, kind: output, shape index: {}]
  %s3 = sld [smem:[#allocation0]]
  $region22: #{tpu_custom_call.1} parent=0
    _
  %s5 = ssub.s32 1, %s3
  %s6 = scalar_select 0, %s5, %s3
  $region1: #{tpu_custom_call.1} parent=0
    #allocation2 [shape = 'u8[8192]{0}', space=vmem, size = 0x2000, scoped, tag = 'input window, operand 0, single buffered']
    #allocation3 [shape = 's32[1]{0}', space=sflag, size = 0x4, scoped, tag = 'scoped memory for tpu_custom_call.1']
    #allocation4 [shape = 's32[1]{0}', space=sflag, size = 0x4, scoped, tag = 'scoped memory for tpu_custom_call.1']
    #allocation5 [shape = 'u8[8192]{0}', space=vmem, size = 0x2000, scoped, tag = 'output window, operand 0, single buffered']
    %7 = vsyncpa [#allocation3], 0
    %8 = vsyncpa [#allocation4], 0
    // Predicated region
    $region2: #{tpu_custom_call.1} parent=1 // pred_check
      _
    $region3: #{tpu_custom_call.1} parent=1 // pred_check_branch
      %10 = sbr.rel (0) target = $region5
    $region4: #{tpu_custom_call.1} parent=1 // pred_region
      %s12 = ssub.s32 256, 256
      %13 = vsyncadd [#allocation3], %s12
      %s14 = sshll.u32 [#allocation2], 4
      %s15 = int_to_ptr.vmem [resolvable:$true] %s14
      %20 = dma.hbm_to_vmem [thread:$0]  %s0, 256, %s15, [#allocation3], 128, 128, 8
    $region5: #{tpu_custom_call.1} parent=1 // pred_fallthru
      _
    // Predicated region
    $region6: #{tpu_custom_call.1} parent=1 // pred_check
      _
    $region7: #{tpu_custom_call.1} parent=1 // pred_check_branch
      %22 = sbr.rel (0) target = $region9
    $region8: #{tpu_custom_call.1} parent=1 // pred_region
      _
    $region9: #{tpu_custom_call.1} parent=1 // pred_fallthru
      _
    // Predicated region
    $region10: #{tpu_custom_call.1} parent=1 // pred_check
      _
    $region11: #{tpu_custom_call.1} parent=1 // pred_check_branch
      %24 = sbr.rel (0) target = $region13
    $region12: #{tpu_custom_call.1} parent=1 // pred_region
      %25 = dma.done [#allocation3], 256
    $region13: #{tpu_custom_call.1} parent=1 // pred_fallthru
      _
    %v26 = vld [vmem:[#allocation2] sm:$0xff]
    %v27 = vld [vmem:[#allocation2 + $0x8] sm:$0xff]
    %vm28 = vcmask 261120
    %v29 = vsel %vm28, %v26, 0.0
    %30 = vadd.xlane.f32.xlu0 %v29
    %v31 = vpop.xlane.xlu0 %30
    %v32 = vsel %vm28, %v27, 0.0
    %33 = vadd.xlane.f32.xlu0 %v32
    %v34 = vpop.xlane.xlu0 %33
    %v35 = vmul.f32 %v26, %v26
    %v36 = vmul.f32 %v27, %v27
    %v37 = vsel %vm28, %v35, 0.0
    %38 = vadd.xlane.f32.xlu0 %v37
    %v39 = vpop.xlane.xlu0 %38
    %v40 = vsel %vm28, %v36, 0.0
    %41 = vadd.xlane.f32.xlu0 %v40
    %v42 = vpop.xlane.xlu0 %41
    %v43 = vmul.f32 %v31, 0.03125
    %v44 = vmul.f32 %v34, 0.03125
    %v45 = vmul.f32 %v43, 32.0
    %v46 = vmul.f32 %v44, 32.0
    %v47 = vmul.f32 %v45, %v43
    %v48 = vmul.f32 %v46, %v44
    %v49 = vsub.f32 %v39, %v47
    %v50 = vsub.f32 %v42, %v48
    %v51 = vmul.f32 %v49, 0.032258064
    %v52 = vmul.f32 %v50, 0.032258064
    %v53 = vmax.f32 %v51, 0.0
    %v54 = vmax.f32 %v52, 0.0
    %v55 = vrsqrt.pop %v53
    %v56 = vmul.f32 %v53, %v55
    %vm57 = vcmp.eq.f32.partialorder %v53, inf
    %v58 = vsel %vm57, %v53, %v56
    %vm59 = vcmp.eq.f32.partialorder %v53, 0.0
    %v60 = vand.u32 %v53, 2147483648
    %v61 = vsel %vm59, %v60, %v58
    %v62 = vrsqrt.pop %v54
    %v63 = vmul.f32 %v54, %v62
    %vm64 = vcmp.eq.f32.partialorder %v54, inf
    %v65 = vsel %vm64, %v54, %v63
    %vm66 = vcmp.eq.f32.partialorder %v54, 0.0
    %v67 = vand.u32 %v54, 2147483648
    %v68 = vsel %vm66, %v67, %v65
    %v69 = vadd.f32 %v61, 1e-06
    %v70 = vadd.f32 %v68, 1e-06
    %v71 = vrcp.pop %v69
    %v72 = vmul.f32 1.0, %v71
    %v73 = vrcp.pop %v70
    %v74 = vmul.f32 1.0, %v73
    %v75 = vld [vmem:[%s1] sm:$0x3]
    %v76 = vsub.f32 %v26, %v43
    %v77 = vsub.f32 %v27, %v44
    %v78 = vmul.f32 %v76, %v72
    %v79 = vmul.f32 %v77, %v74
    %v80 = vlaneseq
    %v81 = vshrl.u32 %v80, 7
    %v82 = vsub.s32 0, %v81
    %v83 = vrot.slane %v75, %v82
    %v84 = vmul.f32 %v78, %v83
    %v85 = vmul.f32 %v79, %v83
    %v86 = vlaneseq
    %v87 = vshrl.u32 %v86, 7
    %v88 = vsub.s32 1, %v87
    %v89 = vrot.slane %v75, %v88
    %v90 = vadd.f32 %v84, %v89
    %v91 = vadd.f32 %v85, %v89
    %92 = vst.msk [vmem:[#allocation5] sm:$0xff] %vm28, %v90
    %93 = vst.msk [vmem:[#allocation5 + $0x8] sm:$0xff] %vm28, %v91
    // Predicated region
    $region14: #{tpu_custom_call.1} parent=1 // pred_check
      _
    $region15: #{tpu_custom_call.1} parent=1 // pred_check_branch
      %95 = sbr.rel (0) target = $region17
    $region16: #{tpu_custom_call.1} parent=1 // pred_region
      %s97 = ssub.s32 256, 256
      %98 = vsyncadd [#allocation4], %s97
      %s99 = sshll.u32 [#allocation5], 4
      %s100 = int_to_ptr.vmem [resolvable:$true] %s99
      %105 = dma.vmem_to_hbm [thread:$0]  %s100, 256, %s2, [#allocation4], 128, 128, 8
    $region17: #{tpu_custom_call.1} parent=1 // pred_fallthru
      _
    // Predicated region
    $region18: #{tpu_custom_call.1} parent=1 // pred_check
      _
    $region19: #{tpu_custom_call.1} parent=1 // pred_check_branch
      %107 = sbr.rel (0) target = $region21
    $region20: #{tpu_custom_call.1} parent=1 // pred_region
      %108 = dma.done [#allocation4], 256
    $region21: #{tpu_custom_call.1} parent=1 // pred_fallthru
      _
    %109 = vsyncpa [#allocation3], 1
    %110 = vsyncpa [#allocation4], 1

</llo_original>
